<compile_context>
chip_gen: v7x
topology: tpu7x:2x2x1
jax: 0.10.0
libtpu: 0.0.40
codegen_flags: <defaults>
</compile_context>

<pallas_src>
import numpy as np
import jax
import jax.numpy as jnp
from jax.experimental import pallas as pl
from jax.experimental.pallas import tpu as pltpu


def _round_up(x, m):
    return ((x + m - 1) // m) * m


def _vmem_budget_bytes():
    """Usable VMEM budget with headroom for Mosaic internal scratch."""
    try:
        cap = int(pltpu.get_tpu_info().vmem_capacity_bytes)
    except Exception:
        cap = 64 * 1024 * 1024  # conservative (v7x-sized) fallback
    return int(cap * 0.75)      # ~96 MiB on v5e/v6e, ~48 MiB on v7x


def _select_tiles(T, S, D, budget):
    """Pick (tT, tS, tD) aligned tiles whose double-buffered set fits VMEM."""
    adj_b, xs_b, out_b = 2, 4, 4  # bf16 adj, f32 xs / out / inv
    Tp0 = _round_up(T, 8)
    Sp0 = _round_up(S, 128)
    Dp0 = _round_up(D, 128)

    tT = min(512, Tp0)
    tD = min(1024, Dp0)

    def ws(tt, ts, td):
        # double-buffered adj/xs/out blocks + tiny inv-count block
        return 2 * (tt * ts * adj_b + ts * td * xs_b + tt * td * out_b + tt * 4)

    # Prefer collapsing the reduction axis entirely (single k step: adj loaded
    # once per row tile, no accumulator revisits, no per-step overhead).
    if ws(tT, Sp0, tD) <= budget:
        tS = Sp0
    else:
        tS = min(2048, Sp0)
        while tS > 128 and ws(tT, tS, tD) > budget:
            tS = max(128, _round_up(tS // 2, 128))
    while tD > 128 and ws(tT, tS, tD) > budget:
        tD = max(128, _round_up(tD // 2, 128))
    while tT > 8 and ws(tT, tS, tD) > budget:
        tT = max(8, _round_up(tT // 2, 8))

    # Ensure >=2 blocks along a 'parallel' axis when cheaply possible so both
    # v7x TensorCores get work (harmless on the single-TC v5e/v6e).
    Tp = _round_up(T, tT)
    Dp = _round_up(D, tD)
    if (Tp // tT) * (Dp // tD) == 1 and Dp >= 256 and (Dp // 2) % 128 == 0:
        tD = Dp // 2

    return tT, tS, tD


def _avg_pool_kernel(adj_ref, xs_ref, inv_ref, out_ref):
    # grid = (T tiles, D tiles, S tiles); reduction (S) axis last.
    k = pl.program_id(2)

    @pl.when(k == 0)
    def _():
        out_ref[...] = jnp.zeros_like(out_ref)

    # adj holds small exact integers (0/1/2...), stored bf16 for bandwidth and
    # up-cast on the VPU; accumulate into the VMEM-resident output block.
    a = adj_ref[...].astype(jnp.float32)
    out_ref[...] += jnp.dot(a, xs_ref[...], preferred_element_type=jnp.float32)

    @pl.when(k == pl.num_programs(2) - 1)
    def _():
        # Epilogue divide-by-count as a broadcast multiply (padded rows have
        # inv == 0, so they stay exactly zero).
        out_ref[...] *= inv_ref[...]


def pallas_avg_pool(adj, counts, xs):
    """Average pooling via one MXU matmul.

    adj:    (T, S) numpy incidence matrix (multiplicity-valued, NOT normalized)
    counts: (T, 1) numpy per-target source counts (>= 1)
    xs:     (S, D) array of source features
    returns (T, D) f32 array, rows ordered by sorted target id.
    """
    adj = np.asarray(adj, dtype=np.float32)
    counts = np.asarray(counts, dtype=np.float32).reshape(-1, 1)
    T, S = adj.shape
    S2, D = xs.shape
    assert S == S2, "adj/xs source-count mismatch"

    budget = _vmem_budget_bytes()
    tT, tS, tD = _select_tiles(T, S, D, budget)
    Tp = _round_up(T, tT)
    Sp = _round_up(S, tS)
    Dp = _round_up(D, tD)

    # --- host-side (numpy) padding of adj / inv-counts: one H2D copy, no
    # device-side pad pass.  Padded rows get inv == 0 so they are exactly 0.
    if (Tp, Sp) != (T, S):
        adj_h = np.zeros((Tp, Sp), np.float32)
        adj_h[:T, :S] = adj
    else:
        adj_h = adj
    inv_h = np.zeros((Tp, 1), np.float32)
    inv_h[:T, :] = 1.0 / counts
    adj_p = jnp.asarray(adj_h, dtype=jnp.bfloat16)   # 0/1/2... exact in bf16
    inv_p = jnp.asarray(inv_h)

    # --- xs: pad on device only if not already aligned.
    xs = xs.astype(jnp.float32)
    if (Sp, Dp) != (S, D):
        xs_p = jnp.zeros((Sp, Dp), jnp.float32).at[:S, :D].set(xs)
    else:
        xs_p = xs

    grid = (Tp // tT, Dp // tD, Sp // tS)

    out_p = pl.pallas_call(
        _avg_pool_kernel,
        out_shape=jax.ShapeDtypeStruct((Tp, Dp), jnp.float32),
        grid_spec=pltpu.PrefetchScalarGridSpec(
            num_scalar_prefetch=0,
            grid=grid,
            in_specs=[
                pl.BlockSpec((tT, tS), lambda i, j, k: (i, k)),   # adj (bf16)
                pl.BlockSpec((tS, tD), lambda i, j, k: (k, j)),   # xs  (f32)
                pl.BlockSpec((tT, 1), lambda i, j, k: (i, 0)),    # 1/count
            ],
            out_specs=pl.BlockSpec((tT, tD), lambda i, j, k: (i, j)),
        ),
        compiler_params=pltpu.CompilerParams(
            dimension_semantics=("parallel", "parallel", "arbitrary"),
            vmem_limit_bytes=budget,
        ),
    )(adj_p, xs_p, inv_p)

    if (Tp, Dp) != (T, D):
        out_p = out_p[:T, :D]
    return out_p


def neighbor_to_adj(neighbor, num_sources):
    """Host glue: (sorted target ids, incidence matrix, per-row counts).

    adj[row, ee] = multiplicity of target `row` in neighbor[ee] (duplicates
    counted, matching the PyTorch reference loop). counts[row] = row sum >= 1.
    """
    targets = sorted({i for ee in neighbor for i in neighbor[ee]})
    row_of = {t: r for r, t in enumerate(targets)}
    adj = np.zeros((len(targets), num_sources), dtype=np.float32)
    for ee, dests in neighbor.items():
        for i in dests:
            adj[row_of[i], ee] += 1.0
    counts = adj.sum(axis=1, keepdims=True)
    return targets, adj, counts


def reference_avg_pool(xs_np, neighbor):
    """Direct port of the PyTorch forward (for verification)."""
    from collections import defaultdict as ddict
    sources = ddict(list)
    for ee in neighbor:
        for i in neighbor[ee]:
            sources[i].append(xs_np[ee])
    result = []
    for i, xxs in sorted(sources.items(), key=lambda l: l[0]):
        result.append(sum(xxs) / len(xxs))
    return np.stack(result, axis=0)


# TODO(synk): for very large, very sparse neighbor structures a CSR-style
# gather/segment-sum via PrefetchScalarGridSpec scalar prefetch would beat the
# dense-incidence matmul (O(nnz*D) work instead of O(T*S*D)).

if __name__ == "__main__":
    key = jax.random.PRNGKey(0)
    num_sources, dim = 8, 32
    xs = jax.random.normal(key, (num_sources, dim), dtype=jnp.float32)

    # Deterministic small neighbor structure: source ee -> list of target ids.
    neighbor = {
        0: [0, 1],
        1: [1, 2],
        2: [0, 2, 3],
        3: [3],
        4: [0, 4],
        5: [4, 5],
        6: [5, 1],
        7: [2, 5],
    }

    targets, adj, counts = neighbor_to_adj(neighbor, num_sources)
    out = pallas_avg_pool(adj, counts, xs)
    out = jax.block_until_ready(out)

    ref = reference_avg_pool(np.asarray(xs), neighbor)
    np.testing.assert_allclose(np.asarray(out), ref, rtol=1e-5, atol=1e-5)
    print("KERNEL_OK")
</pallas_src>

<mosaic_0001>
module attributes {stable_mosaic.version = 11 : i64} {
  func.func @_avg_pool_kernel(%arg0: i32, %arg1: i32, %arg2: i32, %arg3: memref<8x128xbf16, #tpu.memory_space<vmem>>, %arg4: memref<128x128xf32, #tpu.memory_space<vmem>>, %arg5: memref<8x1xf32, #tpu.memory_space<vmem>>, %arg6: memref<8x128xf32, #tpu.memory_space<vmem>>) attributes {dimension_semantics = [#tpu.dimension_semantics<parallel>, #tpu.dimension_semantics<parallel>, #tpu.dimension_semantics<arbitrary>], iteration_bounds = array<i64: 1, 1, 1>, scalar_prefetch = 0 : i64, scratch_operands = 0 : i64, tpu.core_type = #tpu.core_type<tc>, window_params = [{transform_indices = @transform_0, window_bounds = array<i64: 8, 128>}, {transform_indices = @transform_1, window_bounds = array<i64: 128, 128>}, {transform_indices = @transform_2, window_bounds = array<i64: 8, 1>}, {transform_indices = @transform_3, window_bounds = array<i64: 8, 128>}]} {
    %c0_i32 = arith.constant 0 : i32
    %0 = arith.cmpi eq, %arg2, %c0_i32 : i32
    %1 = arith.extui %0 : i1 to i32
    %c0_i32_0 = arith.constant 0 : i32
    %2 = arith.cmpi ne, %1, %c0_i32_0 : i32
    scf.if %2 {
      %cst_10 = arith.constant 0.000000e+00 : f32
      %13 = vector.broadcast %cst_10 : f32 to vector<8x128xf32>
      %c0_11 = arith.constant 0 : index
      %c0_12 = arith.constant 0 : index
      %14 = vector.load %arg6[%c0_11, %c0_12] : memref<8x128xf32, #tpu.memory_space<vmem>>, vector<8x128xf32>
      tpu.vector_store %arg6[%c0_11, %c0_12], %13 {strides = array<i32>} : memref<8x128xf32, #tpu.memory_space<vmem>>, vector<8x128xf32>,
    } else {
    }
    %c0 = arith.constant 0 : index
    %c0_1 = arith.constant 0 : index
    %3 = vector.load %arg3[%c0, %c0_1] : memref<8x128xbf16, #tpu.memory_space<vmem>>, vector<8x128xbf16>
    %4 = arith.extf %3 : vector<8x128xbf16> to vector<8x128xf32>
    %c0_2 = arith.constant 0 : index
    %c0_3 = arith.constant 0 : index
    %5 = vector.load %arg6[%c0_2, %c0_3] : memref<8x128xf32, #tpu.memory_space<vmem>>, vector<8x128xf32>
    %c0_4 = arith.constant 0 : index
    %c0_5 = arith.constant 0 : index
    %6 = vector.load %arg4[%c0_4, %c0_5] : memref<128x128xf32, #tpu.memory_space<vmem>>, vector<128x128xf32>
    %cst = arith.constant dense<0.000000e+00> : vector<8x128xf32>
    %7 = tpu.matmul %4, %6, %cst {dimension_numbers = #tpu.dot_dimension_numbers<[1], [0], [0], [1], [0, 0, 1, 1], [], []>} : vector<8x128xf32>, vector<128x128xf32>, vector<8x128xf32> -> vector<8x128xf32>
    %8 = arith.addf %5, %7 : vector<8x128xf32>
    %c0_6 = arith.constant 0 : index
    %c0_7 = arith.constant 0 : index
    %9 = vector.load %arg6[%c0_6, %c0_7] : memref<8x128xf32, #tpu.memory_space<vmem>>, vector<8x128xf32>
    tpu.vector_store %arg6[%c0_6, %c0_7], %8 {strides = array<i32>} : memref<8x128xf32, #tpu.memory_space<vmem>>, vector<8x128xf32>,
    %c0_i32_8 = arith.constant 0 : i32
    %10 = arith.cmpi eq, %arg2, %c0_i32_8 : i32
    %11 = arith.extui %10 : i1 to i32
    %c0_i32_9 = arith.constant 0 : i32
    %12 = arith.cmpi ne, %11, %c0_i32_9 : i32
    scf.if %12 {
      %c0_10 = arith.constant 0 : index
      %c0_11 = arith.constant 0 : index
      %13 = vector.load %arg6[%c0_10, %c0_11] : memref<8x128xf32, #tpu.memory_space<vmem>>, vector<8x128xf32>
      %c0_12 = arith.constant 0 : index
      %c0_13 = arith.constant 0 : index
      %14 = vector.load %arg5[%c0_12, %c0_13] : memref<8x1xf32, #tpu.memory_space<vmem>>, vector<8x1xf32>
      %15 = vector.broadcast %14 : vector<8x1xf32> to vector<8x128xf32>
      %16 = arith.mulf %13, %15 : vector<8x128xf32>
      %c0_14 = arith.constant 0 : index
      %c0_15 = arith.constant 0 : index
      %17 = vector.load %arg6[%c0_14, %c0_15] : memref<8x128xf32, #tpu.memory_space<vmem>>, vector<8x128xf32>
      tpu.vector_store %arg6[%c0_14, %c0_15], %16 {strides = array<i32>} : memref<8x128xf32, #tpu.memory_space<vmem>>, vector<8x128xf32>,
    } else {
    }
    return
  }
  func.func @transform_0(%arg0: i32, %arg1: i32, %arg2: i32) -> (i32, i32) {
    %c0_i32 = arith.constant 0 : i32
    return %arg0, %arg2 : i32, i32
  }
  func.func @transform_1(%arg0: i32, %arg1: i32, %arg2: i32) -> (i32, i32) {
    %c0_i32 = arith.constant 0 : i32
    return %arg2, %arg1 : i32, i32
  }
  func.func @transform_2(%arg0: i32, %arg1: i32, %arg2: i32) -> (i32, i32) {
    %c0_i32 = arith.constant 0 : i32
    %c0_i32_0 = arith.constant 0 : i32
    return %arg0, %c0_i32 : i32, i32
  }
  func.func @transform_3(%arg0: i32, %arg1: i32, %arg2: i32) -> (i32, i32) {
    %c0_i32 = arith.constant 0 : i32
    return %arg0, %arg1 : i32, i32
  }
}

</mosaic_0001>

<llo_original>
// kernel: tpu_custom_call.1
$region0: #{tpu_custom_call.1}
  #allocation0 [shape = 'u32[]', space=smem, size = 0x4, offset = 0x4, fixed_abs, tag = 'smem constant byte address 0x4 - core index']
  #allocation1 [shape = 'u32[144,128]{1,0:T(1,128)}', space=vmem, size = 0x12000, scoped, tag = 'internal scratch']
  %s0 = inlined_call_operand.vmem [shape: bf16[8,128], index: 0, kind: input, shape index: {}]
  %s1 = inlined_call_operand.hbm [shape: f32[128,128], index: 1, kind: input, shape index: {}]
  %s2 = inlined_call_operand.vmem [shape: f32[8,1], index: 2, kind: input, shape index: {}]
  %s3 = inlined_call_operand.hbm [shape: f32[8,128], index: 3, kind: output, shape index: {}]
  %s4 = sld [smem:[#allocation0]]
  $region34: #{tpu_custom_call.1} parent=0
    _
  %s6 = ssub.s32 1, %s4
  %s7 = scalar_select 0, %s6, %s4
  $region1: #{tpu_custom_call.1} parent=0
    #allocation2 [shape = 'u8[65536]{0}', space=vmem, size = 0x10000, scoped, tag = 'input window, operand 1, single buffered']
    #allocation3 [shape = 's32[1]{0}', space=sflag, size = 0x4, scoped, tag = 'scoped memory for tpu_custom_call.1']
    #allocation4 [shape = 's32[1]{0}', space=sflag, size = 0x4, scoped, tag = 'scoped memory for tpu_custom_call.1']
    #allocation5 [shape = 'u8[4096]{0}', space=vmem, size = 0x1000, scoped, tag = 'output window, operand 0, single buffered']
    %8 = vsyncpa [#allocation3], 0
    %9 = vsyncpa [#allocation4], 0
    // Predicated region
    $region2: #{tpu_custom_call.1} parent=1 // pred_check
      _
    $region3: #{tpu_custom_call.1} parent=1 // pred_check_branch
      %11 = sbr.rel (0) target = $region5
    $region4: #{tpu_custom_call.1} parent=1 // pred_region
      _
    $region5: #{tpu_custom_call.1} parent=1 // pred_fallthru
      _
    // Predicated region
    $region6: #{tpu_custom_call.1} parent=1 // pred_check
      _
    $region7: #{tpu_custom_call.1} parent=1 // pred_check_branch
      %13 = sbr.rel (0) target = $region9
    $region8: #{tpu_custom_call.1} parent=1 // pred_region
      %s15 = ssub.s32 2048, 2048
      %16 = vsyncadd [#allocation3], %s15
      %s17 = sshll.u32 [#allocation2], 4
      %s18 = int_to_ptr.vmem [resolvable:$true] %s17
      %23 = dma.hbm_to_vmem [thread:$0]  %s1, 2048, %s18, [#allocation3], 128, 128, 8
    $region9: #{tpu_custom_call.1} parent=1 // pred_fallthru
      _
    // Predicated region
    $region10: #{tpu_custom_call.1} parent=1 // pred_check
      _
    $region11: #{tpu_custom_call.1} parent=1 // pred_check_branch
      %25 = sbr.rel (0) target = $region13
    $region12: #{tpu_custom_call.1} parent=1 // pred_region
      _
    $region13: #{tpu_custom_call.1} parent=1 // pred_fallthru
      _
    // Predicated region
    $region14: #{tpu_custom_call.1} parent=1 // pred_check
      _
    $region15: #{tpu_custom_call.1} parent=1 // pred_check_branch
      %27 = sbr.rel (0) target = $region17
    $region16: #{tpu_custom_call.1} parent=1 // pred_region
      %28 = dma.done [#allocation3], 2048
    $region17: #{tpu_custom_call.1} parent=1 // pred_fallthru
      _
    %p29 = scmp.eq.s32.totalorder 0, 0
    // Predicated region
    $region18: #{tpu_custom_call.1} parent=1 // pred_check
      %p30 = pneg %p29
    $region19: #{tpu_custom_call.1} parent=1 // pred_check_branch
      %32 = sbr.rel (%p30) target = $region21
    $region20: #{tpu_custom_call.1} parent=1 // pred_region
      %33 = vst [vmem:[#allocation5] sm:$0xff] 0.0
    $region21: #{tpu_custom_call.1} parent=1 // pred_fallthru
      _
    %v34 = vld [vmem:[%s0] sm:$0xf]
    %v35 = vunpack.c.l.bf16 %v34
    %v36 = vld [vmem:[#allocation5] sm:$0xff]
    %v37 = vld [vmem:[#allocation2] sm:$0xff]
    %v38 = vld [vmem:[#allocation2 + $0x8] sm:$0xff]
    %v39 = vld [vmem:[#allocation2 + $0x10] sm:$0xff]
    %v40 = vld [vmem:[#allocation2 + $0x18] sm:$0xff]
    %v41 = vld [vmem:[#allocation2 + $0x20] sm:$0xff]
    %v42 = vld [vmem:[#allocation2 + $0x28] sm:$0xff]
    %v43 = vld [vmem:[#allocation2 + $0x30] sm:$0xff]
    %v44 = vld [vmem:[#allocation2 + $0x38] sm:$0xff]
    %v45 = vld [vmem:[#allocation2 + $0x40] sm:$0xff]
    %v46 = vld [vmem:[#allocation2 + $0x48] sm:$0xff]
    %v47 = vld [vmem:[#allocation2 + $0x50] sm:$0xff]
    %v48 = vld [vmem:[#allocation2 + $0x58] sm:$0xff]
    %v49 = vld [vmem:[#allocation2 + $0x60] sm:$0xff]
    %v50 = vld [vmem:[#allocation2 + $0x68] sm:$0xff]
    %v51 = vld [vmem:[#allocation2 + $0x70] sm:$0xff]
    %v52 = vld [vmem:[#allocation2 + $0x78] sm:$0xff]
    %53 = vmatprep.subr.mxu0 0.0
    %54 = vmatpush1.msra.mxu0 %v37
    %55 = vmatprep.subr.mxu0 0.0
    %56 = vmatpush1.msra.mxu0 %v38
    %57 = vmatprep.subr.mxu0 0.0
    %58 = vmatpush1.msra.mxu0 %v39
    %59 = vmatprep.subr.mxu0 0.0
    %60 = vmatpush1.msra.mxu0 %v40
    %61 = vmatprep.subr.mxu0 0.0
    %62 = vmatpush1.msra.mxu0 %v41
    %63 = vmatprep.subr.mxu0 0.0
    %64 = vmatpush1.msra.mxu0 %v42
    %65 = vmatprep.subr.mxu0 0.0
    %66 = vmatpush1.msra.mxu0 %v43
    %67 = vmatprep.subr.mxu0 0.0
    %68 = vmatpush1.msra.mxu0 %v44
    %69 = vmatprep.subr.mxu0 0.0
    %70 = vmatpush1.msra.mxu0 %v45
    %71 = vmatprep.subr.mxu0 0.0
    %72 = vmatpush1.msra.mxu0 %v46
    %73 = vmatprep.subr.mxu0 0.0
    %74 = vmatpush1.msra.mxu0 %v47
    %75 = vmatprep.subr.mxu0 0.0
    %76 = vmatpush1.msra.mxu0 %v48
    %77 = vmatprep.subr.mxu0 0.0
    %78 = vmatpush1.msra.mxu0 %v49
    %79 = vmatprep.subr.mxu0 0.0
    %80 = vmatpush1.msra.mxu0 %v50
    %81 = vmatprep.subr.mxu0 0.0
    %82 = vmatpush1.msra.mxu0 %v51
    %83 = vmatprep.subr.mxu0 0.0
    %84 = vmatpush1.msra.mxu0 %v52
    %85 = vmatprep.subr.mxu0 0.0
    %86 = vmatpush1.msra.mxu0 0.0
    %87 = vmatprep.subr.mxu0 0.0
    %88 = vmatpush1.msra.mxu0 0.0
    %89 = vmatprep.subr.mxu0 0.0
    %90 = vmatpush1.msra.mxu0 0.0
    %91 = vmatprep.subr.mxu0 0.0
    %92 = vmatpush1.msra.mxu0 0.0
    %93 = vmatprep.subr.mxu0 0.0
    %94 = vmatpush1.msra.mxu0 0.0
    %95 = vmatprep.subr.mxu0 0.0
    %96 = vmatpush1.msra.mxu0 0.0
    %97 = vmatprep.subr.mxu0 0.0
    %98 = vmatpush1.msra.mxu0 0.0
    %99 = vmatprep.subr.mxu0 0.0
    %100 = vmatpush1.msra.mxu0 0.0
    %101 = vmatprep.subr.mxu0 0.0
    %102 = vmatpush1.msra.mxu0 0.0
    %103 = vmatprep.subr.mxu0 0.0
    %104 = vmatpush1.msra.mxu0 0.0
    %105 = vmatprep.subr.mxu0 0.0
    %106 = vmatpush1.msra.mxu0 0.0
    %107 = vmatprep.subr.mxu0 0.0
    %108 = vmatpush1.msra.mxu0 0.0
    %109 = vmatprep.subr.mxu0 0.0
    %110 = vmatpush1.msra.mxu0 0.0
    %111 = vmatprep.subr.mxu0 0.0
    %112 = vmatpush1.msra.mxu0 0.0
    %113 = vmatprep.subr.mxu0 0.0
    %114 = vmatpush1.msra.mxu0 0.0
    %115 = vmatprep.subr.mxu0 0.0
    %116 = vmatpush1.msra.mxu0 0.0
    %117 = vmatprep.mubr.f32.mxu0 0.0
    %118 = vmatmul.mubr.f32.gmra.mrb[0].mxu0 %v35
    %v119 = vpop.f32.mrb[0].mxu0
    %v120 = vadd.f32 0.0, %v119
    %v121 = vpop.f32.mrb[0].mxu0
    %122 = vdwg.mxu0
    %v123 = vadd.f32 %v36, %v120
    %124 = vst [vmem:[#allocation5] sm:$0xff] %v123
    // Predicated region
    $region22: #{tpu_custom_call.1} parent=1 // pred_check
      %p125 = pneg %p29
    $region23: #{tpu_custom_call.1} parent=1 // pred_check_branch
      %127 = sbr.rel (%p125) target = $region25
    $region24: #{tpu_custom_call.1} parent=1 // pred_region
      %v128 = vld [vmem:[#allocation5] sm:$0xff]
      %v129 = vld [vmem:[%s2] sm:$0xff]
      %131 = vset.pattern.permute.xlu0 0
      %132 = vperm.xlu0 %131, %v129
      %v133 = vpop.permute.xlu0 %132
      %v135 = vmul.f32 %v128, %v133
      %136 = vst [vmem:[#allocation5] sm:$0xff] %v135
    $region25: #{tpu_custom_call.1} parent=1 // pred_fallthru
      _
    // Predicated region
    $region26: #{tpu_custom_call.1} parent=1 // pred_check
      _
    $region27: #{tpu_custom_call.1} parent=1 // pred_check_branch
      %138 = sbr.rel (0) target = $region29
    $region28: #{tpu_custom_call.1} parent=1 // pred_region
      %s140 = ssub.s32 128, 128
      %141 = vsyncadd [#allocation4], %s140
      %s143 = sshll.u32 [#allocation5], 4
      %s144 = int_to_ptr.vmem [resolvable:$true] %s143
      %146 = dma.vmem_to_hbm [thread:$0]  %s144, 128, %s3, [#allocation4]
    $region29: #{tpu_custom_call.1} parent=1 // pred_fallthru
      _
    // Predicated region
    $region30: #{tpu_custom_call.1} parent=1 // pred_check
      _
    $region31: #{tpu_custom_call.1} parent=1 // pred_check_branch
      %148 = sbr.rel (0) target = $region33
    $region32: #{tpu_custom_call.1} parent=1 // pred_region
      %149 = dma.done [#allocation4], 128
    $region33: #{tpu_custom_call.1} parent=1 // pred_fallthru
      _
    %150 = vsyncpa [#allocation3], 1
    %151 = vsyncpa [#allocation4], 1

</llo_original>
